<compile_context>
chip_gen: v5e
topology: v5e:2x2
jax: 0.10.0
libtpu: 0.0.40
codegen_flags: <defaults>
</compile_context>

<pallas_src>
import jax
import jax.numpy as jnp
from jax.experimental import pallas as pl
from jax.experimental.pallas import tpu as pltpu


_SQRT_2_OVER_PI = 0.7978845608028654
_LANE = 128


def _gelu_tanh(x):
    # PyTorch nn.GELU(approximate='tanh'):
    # 0.5 * x * (1 + tanh(sqrt(2/pi) * (x + 0.044715 * x^3)))
    return 0.5 * x * (1.0 + jnp.tanh(_SQRT_2_OVER_PI * (x + 0.044715 * x * x * x)))


def mlp_kernel(x_ref, wfc_ref, bfc_ref, wproj_ref, bproj_ref, o_ref):
    # First matmul: feed the MXU native dtypes, accumulate in f32.
    h = jnp.dot(x_ref[...], wfc_ref[...],
                preferred_element_type=jnp.float32)           # (TM, Hp) f32
    h = h + bfc_ref[...].astype(jnp.float32)                  # broadcast (1, Hp)
    g = _gelu_tanh(h)                                         # elementwise in f32
    # Second matmul: cast the activation to the weight dtype (no-op for f32).
    y = jnp.dot(g.astype(wproj_ref.dtype), wproj_ref[...],
                preferred_element_type=jnp.float32)           # (TM, Cp) f32
    y = y + bproj_ref[...].astype(jnp.float32)                # broadcast (1, Cp)
    o_ref[...] = y.astype(o_ref.dtype)


def _pad_axis(a, axis, mult):
    pad = (-a.shape[axis]) % mult
    if pad == 0:
        return a
    widths = [(0, 0)] * a.ndim
    widths[axis] = (0, pad)
    return jnp.pad(a, widths)


def _pick_tm(M, requested, dtype):
    """Largest row tile <= requested that divides M and respects sublane packing."""
    sub = 16 if jnp.dtype(dtype) == jnp.bfloat16 else 8
    if M % sub != 0:
        return M  # full-extent block is always legal
    tm = min(requested, M)
    tm -= tm % sub
    tm = max(tm, sub)
    while M % tm != 0:
        tm -= sub
    return tm


def mlp_forward(x, w_fc, b_fc, w_proj, b_proj, *, tm=256):
    """x: (B, T, C). w_fc: (C, 4C), b_fc: (4C,), w_proj: (4C, C), b_proj: (C,)."""
    B, T, C = x.shape
    Cin, H = w_fc.shape
    assert Cin == C and w_proj.shape == (H, C)
    M = B * T
    x2d = x.reshape(M, C)

    # Lane-dense padding: every last (lane) dim becomes a multiple of 128 so
    # writeback uses unmasked `vst`. Zero padding is exact (gelu(0) == 0 and
    # padded output columns are sliced away). Real configs with C % 128 == 0
    # skip this entirely.
    xp = _pad_axis(x2d, 1, _LANE)
    wfcp = _pad_axis(_pad_axis(w_fc, 0, _LANE), 1, _LANE)
    bfcp = _pad_axis(b_fc.reshape(1, H), 1, _LANE)
    wprojp = _pad_axis(_pad_axis(w_proj, 0, _LANE), 1, _LANE)
    bprojp = _pad_axis(b_proj.reshape(1, C), 1, _LANE)
    Cp = xp.shape[1]
    Hp = wfcp.shape[1]

    tm = _pick_tm(M, tm, x.dtype)
    grid = (M // tm,)

    nbytes = lambda a: a.size * a.dtype.itemsize
    cost = pl.CostEstimate(
        flops=4 * M * Cp * Hp,                     # two (M,Cp)x(Cp,Hp)-class matmuls
        transcendentals=M * Hp,                    # one tanh per hidden element
        bytes_accessed=(nbytes(xp) + nbytes(wfcp) + nbytes(bfcp)
                        + nbytes(wprojp) + nbytes(bprojp)
                        + M * Cp * xp.dtype.itemsize),
    )

    def _call(single_buffer_weights):
        if single_buffer_weights:
            # Constant-index blocks never change -> single buffer saves VMEM.
            def const(shape):
                return pl.BlockSpec(shape, lambda i: (0, 0),
                                    pipeline_mode=pl.Buffered(1))
        else:
            def const(shape):
                return pl.BlockSpec(shape, lambda i: (0, 0))

        return pl.pallas_call(
            mlp_kernel,
            out_shape=jax.ShapeDtypeStruct((M, Cp), x.dtype),
            grid_spec=pltpu.PrefetchScalarGridSpec(
                num_scalar_prefetch=0,
                grid=grid,
                in_specs=[
                    pl.BlockSpec((tm, Cp), lambda i: (i, 0)),   # x row tile
                    const((Cp, Hp)),                            # w_fc (resident)
                    const((1, Hp)),                             # b_fc
                    const((Hp, Cp)),                            # w_proj (resident)
                    const((1, Cp)),                             # b_proj
                ],
                out_specs=pl.BlockSpec((tm, Cp), lambda i: (i, 0)),
            ),
            compiler_params=pltpu.CompilerParams(
                dimension_semantics=("parallel",),   # megacore-shardable row axis
                vmem_limit_bytes=64 << 20,           # <= physical VMEM on v5e/v6e/v7x
            ),
            cost_estimate=cost,
        )(xp, wfcp, bfcp, wprojp, bprojp)

    try:
        out2d = _call(True)
    except Exception:
        # Fallback for jax versions without BlockSpec(pipeline_mode=...):
        # identical math, default (double) buffering of the constant blocks.
        out2d = _call(False)

    return out2d[:, :C].reshape(B, T, C)


def _reference(x, w_fc, b_fc, w_proj, b_proj):
    h = jnp.einsum("btc,ch->bth", x, w_fc) + b_fc
    g = _gelu_tanh(h)
    return jnp.einsum("bth,hc->btc", g, w_proj) + b_proj


if __name__ == "__main__":
    # Small config consistent with the module: n_emb=32 -> hidden=4*32=128.
    B, T, C = 2, 8, 32
    H = 4 * C

    key = jax.random.PRNGKey(0)
    kx, k1, k2, k3, k4 = jax.random.split(key, 5)

    x = jax.random.normal(kx, (B, T, C), dtype=jnp.float32)

    # nn.Linear-style init (uniform in +-1/sqrt(fan_in)), stored pre-transposed.
    w_fc = jax.random.uniform(k1, (C, H), jnp.float32,
                              minval=-1.0 / jnp.sqrt(C), maxval=1.0 / jnp.sqrt(C))
    b_fc = jax.random.uniform(k2, (H,), jnp.float32,
                              minval=-1.0 / jnp.sqrt(C), maxval=1.0 / jnp.sqrt(C))
    w_proj = jax.random.uniform(k3, (H, C), jnp.float32,
                                minval=-1.0 / jnp.sqrt(H), maxval=1.0 / jnp.sqrt(H))
    b_proj = jax.random.uniform(k4, (C,), jnp.float32,
                                minval=-1.0 / jnp.sqrt(H), maxval=1.0 / jnp.sqrt(H))

    out = mlp_forward(x, w_fc, b_fc, w_proj, b_proj)
    jax.block_until_ready(out)

    ref = _reference(x, w_fc, b_fc, w_proj, b_proj)
    assert out.shape == (B, T, C)
    assert jnp.allclose(out, ref, atol=1e-4, rtol=1e-4)

    print("KERNEL_OK")
</pallas_src>

<mosaic_0001>
module attributes {stable_mosaic.version = 11 : i64} {
  func.func @mlp_kernel(%arg0: i32, %arg1: memref<16x128xf32, #tpu.memory_space<vmem>>, %arg2: memref<128x128xf32, #tpu.memory_space<vmem>>, %arg3: memref<1x128xf32, #tpu.memory_space<vmem>>, %arg4: memref<128x128xf32, #tpu.memory_space<vmem>>, %arg5: memref<1x128xf32, #tpu.memory_space<vmem>>, %arg6: memref<16x128xf32, #tpu.memory_space<vmem>>) attributes {dimension_semantics = [#tpu.dimension_semantics<parallel>], iteration_bounds = array<i64: 1>, scalar_prefetch = 0 : i64, scratch_operands = 0 : i64, tpu.core_type = #tpu.core_type<tc>, window_params = [{transform_indices = @transform_0, window_bounds = array<i64: 16, 128>}, {pipeline_mode = #tpu.pipeline_mode<synchronous>, transform_indices = @transform_1, window_bounds = array<i64: 128, 128>}, {pipeline_mode = #tpu.pipeline_mode<synchronous>, transform_indices = @transform_2, window_bounds = array<i64: 1, 128>}, {pipeline_mode = #tpu.pipeline_mode<synchronous>, transform_indices = @transform_3, window_bounds = array<i64: 128, 128>}, {pipeline_mode = #tpu.pipeline_mode<synchronous>, transform_indices = @transform_4, window_bounds = array<i64: 1, 128>}, {transform_indices = @transform_5, window_bounds = array<i64: 16, 128>}]} {
    %c0 = arith.constant 0 : index
    %c0_0 = arith.constant 0 : index
    %0 = vector.load %arg1[%c0, %c0_0] : memref<16x128xf32, #tpu.memory_space<vmem>>, vector<16x128xf32>
    %c0_1 = arith.constant 0 : index
    %c0_2 = arith.constant 0 : index
    %1 = vector.load %arg2[%c0_1, %c0_2] : memref<128x128xf32, #tpu.memory_space<vmem>>, vector<128x128xf32>
    %cst = arith.constant dense<0.000000e+00> : vector<16x128xf32>
    %2 = tpu.matmul %0, %1, %cst {dimension_numbers = #tpu.dot_dimension_numbers<[1], [0], [0], [1], [0, 0, 1, 1], [], []>} : vector<16x128xf32>, vector<128x128xf32>, vector<16x128xf32> -> vector<16x128xf32>
    %c0_3 = arith.constant 0 : index
    %c0_4 = arith.constant 0 : index
    %3 = vector.load %arg3[%c0_3, %c0_4] : memref<1x128xf32, #tpu.memory_space<vmem>>, vector<1x128xf32>
    %4 = vector.broadcast %3 : vector<1x128xf32> to vector<16x128xf32>
    %5 = arith.addf %2, %4 : vector<16x128xf32>
    %cst_5 = arith.constant 5.000000e-01 : f32
    %6 = vector.broadcast %cst_5 : f32 to vector<16x128xf32>
    %7 = arith.mulf %6, %5 : vector<16x128xf32>
    %cst_6 = arith.constant 4.471500e-02 : f32
    %8 = vector.broadcast %cst_6 : f32 to vector<16x128xf32>
    %9 = arith.mulf %8, %5 : vector<16x128xf32>
    %10 = arith.mulf %9, %5 : vector<16x128xf32>
    %11 = arith.mulf %10, %5 : vector<16x128xf32>
    %12 = arith.addf %5, %11 : vector<16x128xf32>
    %cst_7 = arith.constant 0.797884583 : f32
    %13 = vector.broadcast %cst_7 : f32 to vector<16x128xf32>
    %14 = arith.mulf %13, %12 : vector<16x128xf32>
    %15 = math.tanh %14 : vector<16x128xf32>
    %cst_8 = arith.constant 1.000000e+00 : f32
    %16 = vector.broadcast %cst_8 : f32 to vector<16x128xf32>
    %17 = arith.addf %16, %15 : vector<16x128xf32>
    %18 = arith.mulf %7, %17 : vector<16x128xf32>
    %c0_9 = arith.constant 0 : index
    %c0_10 = arith.constant 0 : index
    %19 = vector.load %arg4[%c0_9, %c0_10] : memref<128x128xf32, #tpu.memory_space<vmem>>, vector<128x128xf32>
    %cst_11 = arith.constant dense<0.000000e+00> : vector<16x128xf32>
    %20 = tpu.matmul %18, %19, %cst_11 {dimension_numbers = #tpu.dot_dimension_numbers<[1], [0], [0], [1], [0, 0, 1, 1], [], []>} : vector<16x128xf32>, vector<128x128xf32>, vector<16x128xf32> -> vector<16x128xf32>
    %c0_12 = arith.constant 0 : index
    %c0_13 = arith.constant 0 : index
    %21 = vector.load %arg5[%c0_12, %c0_13] : memref<1x128xf32, #tpu.memory_space<vmem>>, vector<1x128xf32>
    %22 = vector.broadcast %21 : vector<1x128xf32> to vector<16x128xf32>
    %23 = arith.addf %20, %22 : vector<16x128xf32>
    %c0_14 = arith.constant 0 : index
    %c0_15 = arith.constant 0 : index
    %24 = vector.load %arg6[%c0_14, %c0_15] : memref<16x128xf32, #tpu.memory_space<vmem>>, vector<16x128xf32>
    tpu.vector_store %arg6[%c0_14, %c0_15], %23 {strides = array<i32>} : memref<16x128xf32, #tpu.memory_space<vmem>>, vector<16x128xf32>,
    return
  }
  func.func @transform_0(%arg0: i32) -> (i32, i32) {
    %c0_i32 = arith.constant 0 : i32
    %c0_i32_0 = arith.constant 0 : i32
    return %arg0, %c0_i32 : i32, i32
  }
  func.func @transform_1(%arg0: i32) -> (i32, i32) {
    %c0_i32 = arith.constant 0 : i32
    %c0_i32_0 = arith.constant 0 : i32
    %c0_i32_1 = arith.constant 0 : i32
    return %c0_i32, %c0_i32_0 : i32, i32
  }
  func.func @transform_2(%arg0: i32) -> (i32, i32) {
    %c0_i32 = arith.constant 0 : i32
    %c0_i32_0 = arith.constant 0 : i32
    %c0_i32_1 = arith.constant 0 : i32
    return %c0_i32, %c0_i32_0 : i32, i32
  }
  func.func @transform_3(%arg0: i32) -> (i32, i32) {
    %c0_i32 = arith.constant 0 : i32
    %c0_i32_0 = arith.constant 0 : i32
    %c0_i32_1 = arith.constant 0 : i32
    return %c0_i32, %c0_i32_0 : i32, i32
  }
  func.func @transform_4(%arg0: i32) -> (i32, i32) {
    %c0_i32 = arith.constant 0 : i32
    %c0_i32_0 = arith.constant 0 : i32
    %c0_i32_1 = arith.constant 0 : i32
    return %c0_i32, %c0_i32_0 : i32, i32
  }
  func.func @transform_5(%arg0: i32) -> (i32, i32) {
    %c0_i32 = arith.constant 0 : i32
    %c0_i32_0 = arith.constant 0 : i32
    return %arg0, %c0_i32 : i32, i32
  }
}

module attributes {stable_mosaic.version = 11 : i64} {
  func.func @mlp_kernel(%arg0: i32, %arg1: memref<16x128xf32, #tpu.memory_space<vmem>>, %arg2: memref<128x128xf32, #tpu.memory_space<vmem>>, %arg3: memref<1x128xf32, #tpu.memory_space<vmem>>, %arg4: memref<128x128xf32, #tpu.memory_space<vmem>>, %arg5: memref<1x128xf32, #tpu.memory_space<vmem>>, %arg6: memref<16x128xf32, #tpu.memory_space<vmem>>) attributes {dimension_semantics = [#tpu.dimension_semantics<parallel>], iteration_bounds = array<i64: 1>, scalar_prefetch = 0 : i64, scratch_operands = 0 : i64, tpu.core_type = #tpu.core_type<tc>, window_params = [{transform_indices = @transform_0, window_bounds = array<i64: 16, 128>}, {pipeline_mode = #tpu.pipeline_mode<synchronous>, transform_indices = @transform_1, window_bounds = array<i64: 128, 128>}, {pipeline_mode = #tpu.pipeline_mode<synchronous>, transform_indices = @transform_2, window_bounds = array<i64: 1, 128>}, {pipeline_mode = #tpu.pipeline_mode<synchronous>, transform_indices = @transform_3, window_bounds = array<i64: 128, 128>}, {pipeline_mode = #tpu.pipeline_mode<synchronous>, transform_indices = @transform_4, window_bounds = array<i64: 1, 128>}, {transform_indices = @transform_5, window_bounds = array<i64: 16, 128>}]} {
    %c0 = arith.constant 0 : index
    %c0_0 = arith.constant 0 : index
    %0 = vector.load %arg1[%c0, %c0_0] : memref<16x128xf32, #tpu.memory_space<vmem>>, vector<16x128xf32>
    %c0_1 = arith.constant 0 : index
    %c0_2 = arith.constant 0 : index
    %1 = vector.load %arg2[%c0_1, %c0_2] : memref<128x128xf32, #tpu.memory_space<vmem>>, vector<128x128xf32>
    %cst = arith.constant dense<0.000000e+00> : vector<16x128xf32>
    %2 = tpu.matmul %0, %1, %cst {dimension_numbers = #tpu.dot_dimension_numbers<[1], [0], [0], [1], [0, 0, 1, 1], [], []>} : vector<16x128xf32>, vector<128x128xf32>, vector<16x128xf32> -> vector<16x128xf32>
    %c0_3 = arith.constant 0 : index
    %c0_4 = arith.constant 0 : index
    %3 = vector.load %arg3[%c0_3, %c0_4] : memref<1x128xf32, #tpu.memory_space<vmem>>, vector<1x128xf32>
    %4 = vector.broadcast %3 : vector<1x128xf32> to vector<16x128xf32>
    %5 = arith.addf %2, %4 : vector<16x128xf32>
    %cst_5 = arith.constant 5.000000e-01 : f32
    %6 = vector.broadcast %cst_5 : f32 to vector<16x128xf32>
    %7 = arith.mulf %6, %5 : vector<16x128xf32>
    %cst_6 = arith.constant 4.471500e-02 : f32
    %8 = vector.broadcast %cst_6 : f32 to vector<16x128xf32>
    %9 = arith.mulf %8, %5 : vector<16x128xf32>
    %10 = arith.mulf %9, %5 : vector<16x128xf32>
    %11 = arith.mulf %10, %5 : vector<16x128xf32>
    %12 = arith.addf %5, %11 : vector<16x128xf32>
    %cst_7 = arith.constant 0.797884583 : f32
    %13 = vector.broadcast %cst_7 : f32 to vector<16x128xf32>
    %14 = arith.mulf %13, %12 : vector<16x128xf32>
    %15 = math.tanh %14 : vector<16x128xf32>
    %cst_8 = arith.constant 1.000000e+00 : f32
    %16 = vector.broadcast %cst_8 : f32 to vector<16x128xf32>
    %17 = arith.addf %16, %15 : vector<16x128xf32>
    %18 = arith.mulf %7, %17 : vector<16x128xf32>
    %c0_9 = arith.constant 0 : index
    %c0_10 = arith.constant 0 : index
    %19 = vector.load %arg4[%c0_9, %c0_10] : memref<128x128xf32, #tpu.memory_space<vmem>>, vector<128x128xf32>
    %cst_11 = arith.constant dense<0.000000e+00> : vector<16x128xf32>
    %20 = tpu.matmul %18, %19, %cst_11 {dimension_numbers = #tpu.dot_dimension_numbers<[1], [0], [0], [1], [0, 0, 1, 1], [], []>} : vector<16x128xf32>, vector<128x128xf32>, vector<16x128xf32> -> vector<16x128xf32>
    %c0_12 = arith.constant 0 : index
    %c0_13 = arith.constant 0 : index
    %21 = vector.load %arg5[%c0_12, %c0_13] : memref<1x128xf32, #tpu.memory_space<vmem>>, vector<1x128xf32>
    %22 = vector.broadcast %21 : vector<1x128xf32> to vector<16x128xf32>
    %23 = arith.addf %20, %22 : vector<16x128xf32>
    %c0_14 = arith.constant 0 : index
    %c0_15 = arith.constant 0 : index
    %24 = vector.load %arg6[%c0_14, %c0_15] : memref<16x128xf32, #tpu.memory_space<vmem>>, vector<16x128xf32>
    tpu.vector_store %arg6[%c0_14, %c0_15], %23 {strides = array<i32>} : memref<16x128xf32, #tpu.memory_space<vmem>>, vector<16x128xf32>,
    return
  }
  func.func @transform_0(%arg0: i32) -> (i32, i32) {
    %c0_i32 = arith.constant 0 : i32
    %c0_i32_0 = arith.constant 0 : i32
    return %arg0, %c0_i32 : i32, i32
  }
  func.func @transform_1(%arg0: i32) -> (i32, i32) {
    %c0_i32 = arith.constant 0 : i32
    %c0_i32_0 = arith.constant 0 : i32
    %c0_i32_1 = arith.constant 0 : i32
    return %c0_i32, %c0_i32_0 : i32, i32
  }
  func.func @transform_2(%arg0: i32) -> (i32, i32) {
    %c0_i32 = arith.constant 0 : i32
    %c0_i32_0 = arith.constant 0 : i32
    %c0_i32_1 = arith.constant 0 : i32
    return %c0_i32, %c0_i32_0 : i32, i32
  }
  func.func @transform_3(%arg0: i32) -> (i32, i32) {
    %c0_i32 = arith.constant 0 : i32
    %c0_i32_0 = arith.constant 0 : i32
    %c0_i32_1 = arith.constant 0 : i32
    return %c0_i32, %c0_i32_0 : i32, i32
  }
  func.func @transform_4(%arg0: i32) -> (i32, i32) {
    %c0_i32 = arith.constant 0 : i32
    %c0_i32_0 = arith.constant 0 : i32
    %c0_i32_1 = arith.constant 0 : i32
    return %c0_i32, %c0_i32_0 : i32, i32
  }
  func.func @transform_5(%arg0: i32) -> (i32, i32) {
    %c0_i32 = arith.constant 0 : i32
    %c0_i32_0 = arith.constant 0 : i32
    return %arg0, %c0_i32 : i32, i32
  }
}

</mosaic_0001>

<llo_original>
// kernel: tpu_custom_call.1
$region0: #{tpu_custom_call.1}
  #allocation0 [shape = 'u32[]', space=smem, size = 0x4, offset = 0x4, fixed_abs, tag = 'smem constant byte address 0x4 - core index']
  #allocation1 [shape = 'u32[72,128]{1,0:T(1,128)}', space=vmem, size = 0x9000, scoped, tag = 'internal scratch']
  %s0 = inlined_call_operand.hbm [shape: f32[16,128], index: 0, kind: input, shape index: {}]
  %s1 = inlined_call_operand.hbm [shape: f32[128,128], index: 1, kind: input, shape index: {}]
  %s2 = inlined_call_operand.vmem [shape: f32[1,128], index: 2, kind: input, shape index: {}]
  %s3 = inlined_call_operand.hbm [shape: f32[128,128], index: 3, kind: input, shape index: {}]
  %s4 = inlined_call_operand.vmem [shape: f32[1,128], index: 4, kind: input, shape index: {}]
  %s5 = inlined_call_operand.hbm [shape: f32[16,128], index: 5, kind: output, shape index: {}]
  %s6 = sld [smem:[#allocation0]]
  $region42: #{tpu_custom_call.1} parent=0
    _
  %s8 = ssub.s32 1, %s6
  %s9 = scalar_select 0, %s8, %s6
  $region1: #{tpu_custom_call.1} parent=0
    #allocation2 [shape = 'u8[8192]{0}', space=vmem, size = 0x2000, scoped, tag = 'input window, operand 0, single buffered']
    #allocation3 [shape = 's32[1]{0}', space=sflag, size = 0x4, scoped, tag = 'scoped memory for tpu_custom_call.1']
    #allocation4 [shape = 's32[1]{0}', space=sflag, size = 0x4, scoped, tag = 'scoped memory for tpu_custom_call.1']
    #allocation5 [shape = 'u8[65536]{0}', space=vmem, size = 0x10000, scoped, tag = 'input window, operand 1, single buffered']
    #allocation6 [shape = 's32[1]{0}', space=sflag, size = 0x4, scoped, tag = 'scoped memory for tpu_custom_call.1']
    #allocation7 [shape = 'u8[65536]{0}', space=vmem, size = 0x10000, scoped, tag = 'input window, operand 3, single buffered']
    #allocation8 [shape = 'u8[8192]{0}', space=vmem, size = 0x2000, scoped, tag = 'output window, operand 0, single buffered']
    %10 = vsyncpa [#allocation3], 0
    %11 = vsyncpa [#allocation6], 0
    %12 = vsyncpa [#allocation4], 0
    // Predicated region
    $region2: #{tpu_custom_call.1} parent=1 // pred_check
      _
    $region3: #{tpu_custom_call.1} parent=1 // pred_check_branch
      %14 = sbr.rel (0) target = $region5
    $region4: #{tpu_custom_call.1} parent=1 // pred_region
      %16 = vsyncadd [#allocation3], 0
      %s17 = sshll.u32 %s0, 4
      %s18 = int_to_ptr.hbm [resolvable:$true] %s17
      %s19 = sshll.u32 [#allocation2], 4
      %s20 = int_to_ptr.vmem [resolvable:$true] %s19
      %25 = dma.hbm_to_vmem [thread:$0]  %s18, 256, %s20, [#allocation3], 128, 128, 8
    $region5: #{tpu_custom_call.1} parent=1 // pred_fallthru
      _
    // Predicated region
    $region6: #{tpu_custom_call.1} parent=1 // pred_check
      _
    $region7: #{tpu_custom_call.1} parent=1 // pred_check_branch
      %27 = sbr.rel (0) target = $region9
    $region8: #{tpu_custom_call.1} parent=1 // pred_region
      %29 = vsyncadd [#allocation6], 0
      %s30 = sshll.u32 %s1, 4
      %s31 = int_to_ptr.hbm [resolvable:$true] %s30
      %s32 = sshll.u32 [#allocation5], 4
      %s33 = int_to_ptr.vmem [resolvable:$true] %s32
      %38 = dma.hbm_to_vmem [thread:$0]  %s31, 2048, %s33, [#allocation6], 128, 128, 8
    $region9: #{tpu_custom_call.1} parent=1 // pred_fallthru
      _
    // Predicated region
    $region10: #{tpu_custom_call.1} parent=1 // pred_check
      _
    $region11: #{tpu_custom_call.1} parent=1 // pred_check_branch
      %40 = sbr.rel (0) target = $region13
    $region12: #{tpu_custom_call.1} parent=1 // pred_region
      _
    $region13: #{tpu_custom_call.1} parent=1 // pred_fallthru
      _
    // Predicated region
    $region14: #{tpu_custom_call.1} parent=1 // pred_check
      _
    $region15: #{tpu_custom_call.1} parent=1 // pred_check_branch
      %42 = sbr.rel (0) target = $region17
    $region16: #{tpu_custom_call.1} parent=1 // pred_region
      %44 = vsyncadd [#allocation6], 0
      %s45 = sshll.u32 %s3, 4
      %s46 = int_to_ptr.hbm [resolvable:$true] %s45
      %s47 = sshll.u32 [#allocation7], 4
      %s48 = int_to_ptr.vmem [resolvable:$true] %s47
      %53 = dma.hbm_to_vmem [thread:$0]  %s46, 2048, %s48, [#allocation6], 128, 128, 8
    $region17: #{tpu_custom_call.1} parent=1 // pred_fallthru
      _
    // Predicated region
    $region18: #{tpu_custom_call.1} parent=1 // pred_check
      _
    $region19: #{tpu_custom_call.1} parent=1 // pred_check_branch
      %55 = sbr.rel (0) target = $region21
    $region20: #{tpu_custom_call.1} parent=1 // pred_region
      _
    $region21: #{tpu_custom_call.1} parent=1 // pred_fallthru
      _
    // Predicated region
    $region22: #{tpu_custom_call.1} parent=1 // pred_check
      _
    $region23: #{tpu_custom_call.1} parent=1 // pred_check_branch
      %57 = sbr.rel (0) target = $region25
    $region24: #{tpu_custom_call.1} parent=1 // pred_region
      %59 = dma.done [#allocation3], 256
    $region25: #{tpu_custom_call.1} parent=1 // pred_fallthru
      _
    // Predicated region
    $region26: #{tpu_custom_call.1} parent=1 // pred_check
      _
    $region27: #{tpu_custom_call.1} parent=1 // pred_check_branch
      %61 = sbr.rel (0) target = $region29
    $region28: #{tpu_custom_call.1} parent=1 // pred_region
      %63 = dma.done [#allocation6], 2048
    $region29: #{tpu_custom_call.1} parent=1 // pred_fallthru
      _
    // Predicated region
    $region30: #{tpu_custom_call.1} parent=1 // pred_check
      _
    $region31: #{tpu_custom_call.1} parent=1 // pred_check_branch
      %65 = sbr.rel (0) target = $region33
    $region32: #{tpu_custom_call.1} parent=1 // pred_region
      %67 = dma.done [#allocation6], 2048
    $region33: #{tpu_custom_call.1} parent=1 // pred_fallthru
      _
    %v68 = vld [vmem:[#allocation2] sm:$0xff]
    %v69 = vld [vmem:[#allocation2 + $0x8] sm:$0xff]
    %v70 = vld [vmem:[#allocation5] sm:$0xff]
    %v71 = vld [vmem:[#allocation5 + $0x8] sm:$0xff]
    %v72 = vld [vmem:[#allocation5 + $0x10] sm:$0xff]
    %v73 = vld [vmem:[#allocation5 + $0x18] sm:$0xff]
    %v74 = vld [vmem:[#allocation5 + $0x20] sm:$0xff]
    %v75 = vld [vmem:[#allocation5 + $0x28] sm:$0xff]
    %v76 = vld [vmem:[#allocation5 + $0x30] sm:$0xff]
    %v77 = vld [vmem:[#allocation5 + $0x38] sm:$0xff]
    %v78 = vld [vmem:[#allocation5 + $0x40] sm:$0xff]
    %v79 = vld [vmem:[#allocation5 + $0x48] sm:$0xff]
    %v80 = vld [vmem:[#allocation5 + $0x50] sm:$0xff]
    %v81 = vld [vmem:[#allocation5 + $0x58] sm:$0xff]
    %v82 = vld [vmem:[#allocation5 + $0x60] sm:$0xff]
    %v83 = vld [vmem:[#allocation5 + $0x68] sm:$0xff]
    %v84 = vld [vmem:[#allocation5 + $0x70] sm:$0xff]
    %v85 = vld [vmem:[#allocation5 + $0x78] sm:$0xff]
    %v86 = vld [vmem:[%s2] sm:$0x1]
    %v88 = vperm.slane %v86, 0
    %90 = vmatpush.msra.mxu0 %v85
    %91 = vmatpush.msra.mxu0 %v84
    %92 = vmatpush.msra.mxu0 %v83
    %93 = vmatpush.msra.mxu0 %v82
    %94 = vmatpush.msra.mxu0 %v81
    %95 = vmatpush.msra.mxu0 %v80
    %96 = vmatpush.msra.mxu0 %v79
    %97 = vmatpush.msra.mxu0 %v78
    %98 = vmatpush.msra.mxu0 %v77
    %99 = vmatpush.msra.mxu0 %v76
    %100 = vmatpush.msra.mxu0 %v75
    %101 = vmatpush.msra.mxu0 %v74
    %102 = vmatpush.msra.mxu0 %v73
    %103 = vmatpush.msra.mxu0 %v72
    %104 = vmatpush.msra.mxu0 %v71
    %105 = vmatpush.msra.mxu0 %v70
    %106 = vmatmul.f32.gmra.mxu0 %v68
    %v107 = vpop.f32.mrf.mxu0
    %v108 = vadd.f32 %v88, %v107
    %109 = vmatmul.f32.gmra.mxu0 %v69
    %v110 = vpop.f32.mrf.mxu0
    %v111 = vadd.f32 %v88, %v110
    %112 = vdwg.mxu0
    %v113 = vmul.f32 %v108, 0.5
    %v114 = vmul.f32 %v111, 0.5
    %v115 = vmul.f32 %v108, 0.044715
    %v116 = vmul.f32 %v111, 0.044715
    %v117 = vmul.f32 %v115, %v108
    %v118 = vmul.f32 %v116, %v111
    %v119 = vmul.f32 %v117, %v108
    %v120 = vmul.f32 %v118, %v111
    %v121 = vadd.f32 %v108, %v119
    %v122 = vadd.f32 %v111, %v120
    %v123 = vmul.f32 %v121, 0.7978846
    %v124 = vmul.f32 %v122, 0.7978846
    %v125 = vtanh.pop %v123
    %v126 = vtanh.pop %v124
    %v127 = vadd.f32 %v125, 1.0
    %v128 = vadd.f32 %v126, 1.0
    %v129 = vmul.f32 %v113, %v127
    %v130 = vmul.f32 %v114, %v128
    %v131 = vld [vmem:[#allocation7] sm:$0xff]
    %v132 = vld [vmem:[#allocation7 + $0x8] sm:$0xff]
    %v133 = vld [vmem:[#allocation7 + $0x10] sm:$0xff]
    %v134 = vld [vmem:[#allocation7 + $0x18] sm:$0xff]
    %v135 = vld [vmem:[#allocation7 + $0x20] sm:$0xff]
    %v136 = vld [vmem:[#allocation7 + $0x28] sm:$0xff]
    %v137 = vld [vmem:[#allocation7 + $0x30] sm:$0xff]
    %v138 = vld [vmem:[#allocation7 + $0x38] sm:$0xff]
    %v139 = vld [vmem:[#allocation7 + $0x40] sm:$0xff]
    %v140 = vld [vmem:[#allocation7 + $0x48] sm:$0xff]
    %v141 = vld [vmem:[#allocation7 + $0x50] sm:$0xff]
    %v142 = vld [vmem:[#allocation7 + $0x58] sm:$0xff]
    %v143 = vld [vmem:[#allocation7 + $0x60] sm:$0xff]
    %v144 = vld [vmem:[#allocation7 + $0x68] sm:$0xff]
    %v145 = vld [vmem:[#allocation7 + $0x70] sm:$0xff]
    %v146 = vld [vmem:[#allocation7 + $0x78] sm:$0xff]
    %v147 = vld [vmem:[%s4] sm:$0x1]
    %v149 = vperm.slane %v147, 0
    %151 = vmatpush.msra.mxu0 %v146
    %152 = vmatpush.msra.mxu0 %v145
    %153 = vmatpush.msra.mxu0 %v144
    %154 = vmatpush.msra.mxu0 %v143
    %155 = vmatpush.msra.mxu0 %v142
    %156 = vmatpush.msra.mxu0 %v141
    %157 = vmatpush.msra.mxu0 %v140
    %158 = vmatpush.msra.mxu0 %v139
    %159 = vmatpush.msra.mxu0 %v138
    %160 = vmatpush.msra.mxu0 %v137
    %161 = vmatpush.msra.mxu0 %v136
    %162 = vmatpush.msra.mxu0 %v135
    %163 = vmatpush.msra.mxu0 %v134
    %164 = vmatpush.msra.mxu0 %v133
    %165 = vmatpush.msra.mxu0 %v132
    %166 = vmatpush.msra.mxu0 %v131
    %167 = vmatmul.f32.gmra.mxu0 %v129
    %v168 = vpop.f32.mrf.mxu0
    %v169 = vadd.f32 %v149, %v168
    %170 = vmatmul.f32.gmra.mxu0 %v130
    %v171 = vpop.f32.mrf.mxu0
    %v172 = vadd.f32 %v149, %v171
    %173 = vdwg.mxu0
    %174 = vst [vmem:[#allocation8] sm:$0xff] %v169
    %175 = vst [vmem:[#allocation8 + $0x8] sm:$0xff] %v172
    // Predicated region
    $region34: #{tpu_custom_call.1} parent=1 // pred_check
      _
    $region35: #{tpu_custom_call.1} parent=1 // pred_check_branch
      %177 = sbr.rel (0) target = $region37
    $region36: #{tpu_custom_call.1} parent=1 // pred_region
      %179 = vsyncadd [#allocation4], 0
      %s180 = sshll.u32 [#allocation8], 4
      %s181 = int_to_ptr.vmem [resolvable:$true] %s180
      %s182 = sshll.u32 %s5, 4
      %s183 = int_to_ptr.hbm [resolvable:$true] %s182
      %188 = dma.vmem_to_hbm [thread:$0]  %s181, 256, %s183, [#allocation4], 128, 128, 8
    $region37: #{tpu_custom_call.1} parent=1 // pred_fallthru
      _
    // Predicated region
    $region38: #{tpu_custom_call.1} parent=1 // pred_check
      _
    $region39: #{tpu_custom_call.1} parent=1 // pred_check_branch
      %190 = sbr.rel (0) target = $region41
    $region40: #{tpu_custom_call.1} parent=1 // pred_region
      %192 = dma.done [#allocation4], 256
    $region41: #{tpu_custom_call.1} parent=1 // pred_fallthru
      _
    %193 = vsyncpa [#allocation3], 1
    %194 = vsyncpa [#allocation6], 1
    %195 = vsyncpa [#allocation4], 1

// kernel: tpu_custom_call.1
$region0: #{tpu_custom_call.1}
  #allocation0 [shape = 'u32[]', space=smem, size = 0x4, offset = 0x4, fixed_abs, tag = 'smem constant byte address 0x4 - core index']
  #allocation1 [shape = 'u32[72,128]{1,0:T(1,128)}', space=vmem, size = 0x9000, scoped, tag = 'internal scratch']
  %s0 = inlined_call_operand.hbm [shape: f32[16,128], index: 0, kind: input, shape index: {}]
  %s1 = inlined_call_operand.hbm [shape: f32[128,128], index: 1, kind: input, shape index: {}]
  %s2 = inlined_call_operand.vmem [shape: f32[1,128], index: 2, kind: input, shape index: {}]
  %s3 = inlined_call_operand.hbm [shape: f32[128,128], index: 3, kind: input, shape index: {}]
  %s4 = inlined_call_operand.vmem [shape: f32[1,128], index: 4, kind: input, shape index: {}]
  %s5 = inlined_call_operand.hbm [shape: f32[16,128], index: 5, kind: output, shape index: {}]
  %s6 = sld [smem:[#allocation0]]
  $region42: #{tpu_custom_call.1} parent=0
    _
  %s8 = ssub.s32 1, %s6
  %s9 = scalar_select 0, %s8, %s6
  $region1: #{tpu_custom_call.1} parent=0
    #allocation2 [shape = 'u8[8192]{0}', space=vmem, size = 0x2000, scoped, tag = 'input window, operand 0, single buffered']
    #allocation3 [shape = 's32[1]{0}', space=sflag, size = 0x4, scoped, tag = 'scoped memory for tpu_custom_call.1']
    #allocation4 [shape = 's32[1]{0}', space=sflag, size = 0x4, scoped, tag = 'scoped memory for tpu_custom_call.1']
    #allocation5 [shape = 'u8[65536]{0}', space=vmem, size = 0x10000, scoped, tag = 'input window, operand 1, single buffered']
    #allocation6 [shape = 's32[1]{0}', space=sflag, size = 0x4, scoped, tag = 'scoped memory for tpu_custom_call.1']
    #allocation7 [shape = 'u8[65536]{0}', space=vmem, size = 0x10000, scoped, tag = 'input window, operand 3, single buffered']
    #allocation8 [shape = 'u8[8192]{0}', space=vmem, size = 0x2000, scoped, tag = 'output window, operand 0, single buffered']
    %10 = vsyncpa [#allocation3], 0
    %11 = vsyncpa [#allocation6], 0
    %12 = vsyncpa [#allocation4], 0
    // Predicated region
    $region2: #{tpu_custom_call.1} parent=1 // pred_check
      _
    $region3: #{tpu_custom_call.1} parent=1 // pred_check_branch
      %14 = sbr.rel (0) target = $region5
    $region4: #{tpu_custom_call.1} parent=1 // pred_region
      %16 = vsyncadd [#allocation3], 0
      %s17 = sshll.u32 %s0, 4
      %s18 = int_to_ptr.hbm [resolvable:$true] %s17
      %s19 = sshll.u32 [#allocation2], 4
      %s20 = int_to_ptr.vmem [resolvable:$true] %s19
      %25 = dma.hbm_to_vmem [thread:$0]  %s18, 256, %s20, [#allocation3], 128, 128, 8
    $region5: #{tpu_custom_call.1} parent=1 // pred_fallthru
      _
    // Predicated region
    $region6: #{tpu_custom_call.1} parent=1 // pred_check
      _
    $region7: #{tpu_custom_call.1} parent=1 // pred_check_branch
      %27 = sbr.rel (0) target = $region9
    $region8: #{tpu_custom_call.1} parent=1 // pred_region
      %29 = vsyncadd [#allocation6], 0
      %s30 = sshll.u32 %s1, 4
      %s31 = int_to_ptr.hbm [resolvable:$true] %s30
      %s32 = sshll.u32 [#allocation5], 4
      %s33 = int_to_ptr.vmem [resolvable:$true] %s32
      %38 = dma.hbm_to_vmem [thread:$0]  %s31, 2048, %s33, [#allocation6], 128, 128, 8
    $region9: #{tpu_custom_call.1} parent=1 // pred_fallthru
      _
    // Predicated region
    $region10: #{tpu_custom_call.1} parent=1 // pred_check
      _
    $region11: #{tpu_custom_call.1} parent=1 // pred_check_branch
      %40 = sbr.rel (0) target = $region13
    $region12: #{tpu_custom_call.1} parent=1 // pred_region
      _
    $region13: #{tpu_custom_call.1} parent=1 // pred_fallthru
      _
    // Predicated region
    $region14: #{tpu_custom_call.1} parent=1 // pred_check
      _
    $region15: #{tpu_custom_call.1} parent=1 // pred_check_branch
      %42 = sbr.rel (0) target = $region17
    $region16: #{tpu_custom_call.1} parent=1 // pred_region
      %44 = vsyncadd [#allocation6], 0
      %s45 = sshll.u32 %s3, 4
      %s46 = int_to_ptr.hbm [resolvable:$true] %s45
      %s47 = sshll.u32 [#allocation7], 4
      %s48 = int_to_ptr.vmem [resolvable:$true] %s47
      %53 = dma.hbm_to_vmem [thread:$0]  %s46, 2048, %s48, [#allocation6], 128, 128, 8
    $region17: #{tpu_custom_call.1} parent=1 // pred_fallthru
      _
    // Predicated region
    $region18: #{tpu_custom_call.1} parent=1 // pred_check
      _
    $region19: #{tpu_custom_call.1} parent=1 // pred_check_branch
      %55 = sbr.rel (0) target = $region21
    $region20: #{tpu_custom_call.1} parent=1 // pred_region
      _
    $region21: #{tpu_custom_call.1} parent=1 // pred_fallthru
      _
    // Predicated region
    $region22: #{tpu_custom_call.1} parent=1 // pred_check
      _
    $region23: #{tpu_custom_call.1} parent=1 // pred_check_branch
      %57 = sbr.rel (0) target = $region25
    $region24: #{tpu_custom_call.1} parent=1 // pred_region
      %59 = dma.done [#allocation3], 256
    $region25: #{tpu_custom_call.1} parent=1 // pred_fallthru
      _
    // Predicated region
    $region26: #{tpu_custom_call.1} parent=1 // pred_check
      _
    $region27: #{tpu_custom_call.1} parent=1 // pred_check_branch
      %61 = sbr.rel (0) target = $region29
    $region28: #{tpu_custom_call.1} parent=1 // pred_region
      %63 = dma.done [#allocation6], 2048
    $region29: #{tpu_custom_call.1} parent=1 // pred_fallthru
      _
    // Predicated region
    $region30: #{tpu_custom_call.1} parent=1 // pred_check
      _
    $region31: #{tpu_custom_call.1} parent=1 // pred_check_branch
      %65 = sbr.rel (0) target = $region33
    $region32: #{tpu_custom_call.1} parent=1 // pred_region
      %67 = dma.done [#allocation6], 2048
    $region33: #{tpu_custom_call.1} parent=1 // pred_fallthru
      _
    %v68 = vld [vmem:[#allocation2] sm:$0xff]
    %v69 = vld [vmem:[#allocation2 + $0x8] sm:$0xff]
    %v70 = vld [vmem:[#allocation5] sm:$0xff]
    %v71 = vld [vmem:[#allocation5 + $0x8] sm:$0xff]
    %v72 = vld [vmem:[#allocation5 + $0x10] sm:$0xff]
    %v73 = vld [vmem:[#allocation5 + $0x18] sm:$0xff]
    %v74 = vld [vmem:[#allocation5 + $0x20] sm:$0xff]
    %v75 = vld [vmem:[#allocation5 + $0x28] sm:$0xff]
    %v76 = vld [vmem:[#allocation5 + $0x30] sm:$0xff]
    %v77 = vld [vmem:[#allocation5 + $0x38] sm:$0xff]
    %v78 = vld [vmem:[#allocation5 + $0x40] sm:$0xff]
    %v79 = vld [vmem:[#allocation5 + $0x48] sm:$0xff]
    %v80 = vld [vmem:[#allocation5 + $0x50] sm:$0xff]
    %v81 = vld [vmem:[#allocation5 + $0x58] sm:$0xff]
    %v82 = vld [vmem:[#allocation5 + $0x60] sm:$0xff]
    %v83 = vld [vmem:[#allocation5 + $0x68] sm:$0xff]
    %v84 = vld [vmem:[#allocation5 + $0x70] sm:$0xff]
    %v85 = vld [vmem:[#allocation5 + $0x78] sm:$0xff]
    %v86 = vld [vmem:[%s2] sm:$0x1]
    %v88 = vperm.slane %v86, 0
    %90 = vmatpush.msra.mxu0 %v85
    %91 = vmatpush.msra.mxu0 %v84
    %92 = vmatpush.msra.mxu0 %v83
    %93 = vmatpush.msra.mxu0 %v82
    %94 = vmatpush.msra.mxu0 %v81
    %95 = vmatpush.msra.mxu0 %v80
    %96 = vmatpush.msra.mxu0 %v79
    %97 = vmatpush.msra.mxu0 %v78
    %98 = vmatpush.msra.mxu0 %v77
    %99 = vmatpush.msra.mxu0 %v76
    %100 = vmatpush.msra.mxu0 %v75
    %101 = vmatpush.msra.mxu0 %v74
    %102 = vmatpush.msra.mxu0 %v73
    %103 = vmatpush.msra.mxu0 %v72
    %104 = vmatpush.msra.mxu0 %v71
    %105 = vmatpush.msra.mxu0 %v70
    %106 = vmatmul.f32.gmra.mxu0 %v68
    %v107 = vpop.f32.mrf.mxu0
    %v108 = vadd.f32 %v88, %v107
    %109 = vmatmul.f32.gmra.mxu0 %v69
    %v110 = vpop.f32.mrf.mxu0
    %v111 = vadd.f32 %v88, %v110
    %112 = vdwg.mxu0
    %v113 = vmul.f32 %v108, 0.5
    %v114 = vmul.f32 %v111, 0.5
    %v115 = vmul.f32 %v108, 0.044715
    %v116 = vmul.f32 %v111, 0.044715
    %v117 = vmul.f32 %v115, %v108
    %v118 = vmul.f32 %v116, %v111
    %v119 = vmul.f32 %v117, %v108
    %v120 = vmul.f32 %v118, %v111
    %v121 = vadd.f32 %v108, %v119
    %v122 = vadd.f32 %v111, %v120
    %v123 = vmul.f32 %v121, 0.7978846
    %v124 = vmul.f32 %v122, 0.7978846
    %v125 = vtanh.pop %v123
    %v126 = vtanh.pop %v124
    %v127 = vadd.f32 %v125, 1.0
    %v128 = vadd.f32 %v126, 1.0
    %v129 = vmul.f32 %v113, %v127
    %v130 = vmul.f32 %v114, %v128
    %v131 = vld [vmem:[#allocation7] sm:$0xff]
    %v132 = vld [vmem:[#allocation7 + $0x8] sm:$0xff]
    %v133 = vld [vmem:[#allocation7 + $0x10] sm:$0xff]
    %v134 = vld [vmem:[#allocation7 + $0x18] sm:$0xff]
    %v135 = vld [vmem:[#allocation7 + $0x20] sm:$0xff]
    %v136 = vld [vmem:[#allocation7 + $0x28] sm:$0xff]
    %v137 = vld [vmem:[#allocation7 + $0x30] sm:$0xff]
    %v138 = vld [vmem:[#allocation7 + $0x38] sm:$0xff]
    %v139 = vld [vmem:[#allocation7 + $0x40] sm:$0xff]
    %v140 = vld [vmem:[#allocation7 + $0x48] sm:$0xff]
    %v141 = vld [vmem:[#allocation7 + $0x50] sm:$0xff]
    %v142 = vld [vmem:[#allocation7 + $0x58] sm:$0xff]
    %v143 = vld [vmem:[#allocation7 + $0x60] sm:$0xff]
    %v144 = vld [vmem:[#allocation7 + $0x68] sm:$0xff]
    %v145 = vld [vmem:[#allocation7 + $0x70] sm:$0xff]
    %v146 = vld [vmem:[#allocation7 + $0x78] sm:$0xff]
    %v147 = vld [vmem:[%s4] sm:$0x1]
    %v149 = vperm.slane %v147, 0
    %151 = vmatpush.msra.mxu0 %v146
    %152 = vmatpush.msra.mxu0 %v145
    %153 = vmatpush.msra.mxu0 %v144
    %154 = vmatpush.msra.mxu0 %v143
    %155 = vmatpush.msra.mxu0 %v142
    %156 = vmatpush.msra.mxu0 %v141
    %157 = vmatpush.msra.mxu0 %v140
    %158 = vmatpush.msra.mxu0 %v139
    %159 = vmatpush.msra.mxu0 %v138
    %160 = vmatpush.msra.mxu0 %v137
    %161 = vmatpush.msra.mxu0 %v136
    %162 = vmatpush.msra.mxu0 %v135
    %163 = vmatpush.msra.mxu0 %v134
    %164 = vmatpush.msra.mxu0 %v133
    %165 = vmatpush.msra.mxu0 %v132
    %166 = vmatpush.msra.mxu0 %v131
    %167 = vmatmul.f32.gmra.mxu0 %v129
    %v168 = vpop.f32.mrf.mxu0
    %v169 = vadd.f32 %v149, %v168
    %170 = vmatmul.f32.gmra.mxu0 %v130
    %v171 = vpop.f32.mrf.mxu0
    %v172 = vadd.f32 %v149, %v171
    %173 = vdwg.mxu0
    %174 = vst [vmem:[#allocation8] sm:$0xff] %v169
    %175 = vst [vmem:[#allocation8 + $0x8] sm:$0xff] %v172
    // Predicated region
    $region34: #{tpu_custom_call.1} parent=1 // pred_check
      _
    $region35: #{tpu_custom_call.1} parent=1 // pred_check_branch
      %177 = sbr.rel (0) target = $region37
    $region36: #{tpu_custom_call.1} parent=1 // pred_region
      %179 = vsyncadd [#allocation4], 0
      %s180 = sshll.u32 [#allocation8], 4
      %s181 = int_to_ptr.vmem [resolvable:$true] %s180
      %s182 = sshll.u32 %s5, 4
      %s183 = int_to_ptr.hbm [resolvable:$true] %s182
      %188 = dma.vmem_to_hbm [thread:$0]  %s181, 256, %s183, [#allocation4], 128, 128, 8
    $region37: #{tpu_custom_call.1} parent=1 // pred_fallthru
      _
    // Predicated region
    $region38: #{tpu_custom_call.1} parent=1 // pred_check
      _
    $region39: #{tpu_custom_call.1} parent=1 // pred_check_branch
      %190 = sbr.rel (0) target = $region41
    $region40: #{tpu_custom_call.1} parent=1 // pred_region
      %192 = dma.done [#allocation4], 256
    $region41: #{tpu_custom_call.1} parent=1 // pred_fallthru
      _
    %193 = vsyncpa [#allocation3], 1
    %194 = vsyncpa [#allocation6], 1
    %195 = vsyncpa [#allocation4], 1

</llo_original>
